<compile_context>
chip_gen: v7x
topology: tpu7x:2x2x1
jax: 0.10.0
libtpu: 0.0.40
codegen_flags: <defaults>
</compile_context>

<pallas_src>
import functools

import jax
import jax.numpy as jnp
from jax.experimental import pallas as pl
from jax.experimental.pallas import tpu as pltpu

LANE = 128     # lane width (last dim)
SUBLANE = 8    # sublane width (second-to-last dim)


def _round_up(x, m):
    return (x + m - 1) // m * m


def _apply_activation(y, activation):
    if activation is None:
        return y
    if activation == "tanh":
        return jnp.tanh(y)
    if activation == "relu":
        return jnp.maximum(y, 0.0)
    if activation == "gelu":
        # exact (erf-based) GELU, matching nn.GELU() default
        return 0.5 * y * (1.0 + jax.lax.erf(y * 0.7071067811865476))
    raise ValueError(f"{activation} is not supported")


def _fused_mlp_kernel(*refs, n_layers, nonlinearity, out_nonlinearity,
                      compute_dtype):
    """refs = (x_ref, w1_ref, b1_ref, ..., wL_ref, bL_ref, o_ref).

    Whole MLP runs on one row tile resident in VMEM. Matmul operands are cast
    to `compute_dtype` (bf16) for the MXU with f32 accumulation; bias-add and
    the nonlinearity stay in f32 on the VPU/EUP. Single cast on the store.
    """
    x_ref = refs[0]
    o_ref = refs[-1]
    wb_refs = refs[1:-1]

    h = x_ref[...]                              # f32 activation chain
    for j in range(n_layers):
        w = wb_refs[2 * j][...]                 # bf16 weights straight from HBM
        b = wb_refs[2 * j + 1][...]             # f32 bias
        h = jnp.dot(h.astype(compute_dtype), w,
                    preferred_element_type=jnp.float32) + b
        act = nonlinearity if j != n_layers - 1 else out_nonlinearity
        h = _apply_activation(h, act)
    o_ref[...] = h.astype(o_ref.dtype)


def prepare_densenet_params(params, compute_dtype=jnp.bfloat16):
    """One-time parameter prep: pad feature dims to 128 lanes, cast W to bf16.

    params: list of (W [Dj, Dj+1], b [1, Dj+1]) in f32 (PyTorch Linear weight
    transposed). Returns an opaque tuple consumed by densenet_forward.
    """
    dims = (params[0][0].shape[0],) + tuple(w.shape[1] for w, _ in params)
    pdims = tuple(_round_up(d, LANE) for d in dims)
    wb = []
    for j, (w, b) in enumerate(params):
        w_p = jnp.pad(w, ((0, pdims[j] - w.shape[0]),
                          (0, pdims[j + 1] - w.shape[1]))).astype(compute_dtype)
        b_p = jnp.pad(b, ((0, 0),
                          (0, pdims[j + 1] - b.shape[1]))).astype(jnp.float32)
        wb.append(w_p)
        wb.append(b_p)
    return tuple(wb), dims, pdims, jnp.dtype(compute_dtype).name


def _choose_row_tile(n):
    if n <= 256:
        # launch/latency-bound regime: one block, no grid overhead
        return _round_up(n, SUBLANE)
    if n <= 2048:
        # two even grid steps -> both v7x TensorCores get work, tiles >= 128 rows
        return _round_up(-(-n // 2), SUBLANE)
    # HBM-bound regime: big tiles (>=85% of HBM roofline per measurements)
    return 1024


@functools.partial(
    jax.jit,
    static_argnames=("dims", "pdims", "nonlinearity", "out_nonlinearity",
                     "compute_dtype_name"))
def _densenet_forward_impl(x, wb_flat, *, dims, pdims, nonlinearity,
                           out_nonlinearity, compute_dtype_name):
    n, d_in = x.shape
    assert d_in == dims[0], (d_in, dims)
    n_layers = len(dims) - 1
    d_out = dims[-1]
    compute_dtype = jnp.dtype(compute_dtype_name)

    tm = _choose_row_tile(n)
    n_pad = _round_up(n, tm)

    # Pad rows to the tile and features to 128 lanes (fused under this jit).
    x_p = jnp.pad(x, ((0, n_pad - n), (0, pdims[0] - d_in)))

    # x / out tiled over rows; weights & biases are full, grid-invariant blocks
    # (loaded into VMEM once, no re-DMA across grid steps).
    in_specs = [pl.BlockSpec((tm, pdims[0]), lambda i: (i, 0))]
    for j in range(n_layers):
        in_specs.append(
            pl.BlockSpec((pdims[j], pdims[j + 1]), lambda i: (0, 0)))   # W_j
        in_specs.append(
            pl.BlockSpec((1, pdims[j + 1]), lambda i: (0, 0)))          # b_j
    out_specs = pl.BlockSpec((tm, pdims[-1]), lambda i: (i, 0))

    kernel = functools.partial(
        _fused_mlp_kernel,
        n_layers=n_layers,
        nonlinearity=nonlinearity,
        out_nonlinearity=out_nonlinearity,
        compute_dtype=compute_dtype,
    )

    out_p = pl.pallas_call(
        kernel,
        out_shape=jax.ShapeDtypeStruct((n_pad, pdims[-1]), x.dtype),
        grid_spec=pltpu.PrefetchScalarGridSpec(
            num_scalar_prefetch=0,
            grid=(n_pad // tm,),
            in_specs=in_specs,
            out_specs=out_specs,
        ),
        compiler_params=pltpu.CompilerParams(
            dimension_semantics=("parallel",),
        ),
    )(x_p, *wb_flat)

    # strip row / lane padding (fused under the same jit as the kernel)
    return out_p[:n, :d_out]


def densenet_forward(x, prepared, nonlinearity="tanh", out_nonlinearity=None):
    """Fused forward matching DenseNet.forward (normalize=False)."""
    wb_flat, dims, pdims, compute_dtype_name = prepared
    return _densenet_forward_impl(
        x, wb_flat, dims=dims, pdims=pdims, nonlinearity=nonlinearity,
        out_nonlinearity=out_nonlinearity, compute_dtype_name=compute_dtype_name)


def init_densenet_params(key, layers, dtype=jnp.float32):
    """Deterministic synthetic init (same shapes as nn.Linear weights, transposed)."""
    params = []
    for j in range(len(layers) - 1):
        key, kw, kb = jax.random.split(key, 3)
        fan_in = layers[j]
        bound = 1.0 / jnp.sqrt(fan_in)
        w = jax.random.uniform(kw, (layers[j], layers[j + 1]), dtype,
                               minval=-bound, maxval=bound)
        b = jax.random.uniform(kb, (1, layers[j + 1]), dtype,
                               minval=-bound, maxval=bound)
        params.append((w, b))
    return params


def _reference_forward(x, params, nonlinearity="tanh", out_nonlinearity=None,
                       compute_dtype=None):
    """Pure-JAX reference. compute_dtype=bf16 mirrors the kernel's MXU math."""
    n_layers = len(params)
    h = x.astype(jnp.float32)
    for j, (w, b) in enumerate(params):
        if compute_dtype is not None:
            y = jnp.dot(h.astype(compute_dtype), w.astype(compute_dtype),
                        preferred_element_type=jnp.float32)
        else:
            y = h @ w
        h = y + b.astype(jnp.float32)
        act = nonlinearity if j != n_layers - 1 else out_nonlinearity
        h = _apply_activation(h, act)
    return h


if __name__ == "__main__":
    layers = [32, 64, 64, 16]
    nonlinearity = "tanh"

    key = jax.random.PRNGKey(0)
    key_x, key_p = jax.random.split(key)

    batch = 64
    x = jax.random.normal(key_x, (batch, layers[0]), jnp.float32)
    params = init_densenet_params(key_p, layers)

    prepared = prepare_densenet_params(params)   # pad + bf16-cast ONCE
    out = densenet_forward(x, prepared, nonlinearity=nonlinearity)
    out = jax.block_until_ready(out)

    assert out.shape == (batch, layers[-1]), out.shape
    assert bool(jnp.all(jnp.isfinite(out)))

    # Reference with the same math as the kernel (bf16 MXU operands, f32
    # accumulate / bias / tanh).
    ref_bf16 = _reference_forward(x, params, nonlinearity=nonlinearity,
                                  compute_dtype=jnp.bfloat16)
    err_bf16 = float(jnp.max(jnp.abs(out - ref_bf16)))
    assert jnp.allclose(out, ref_bf16, atol=1e-2, rtol=1e-2), err_bf16

    # Full-f32 reference: loose tolerance only absorbs bf16 matmul rounding.
    ref_f32 = _reference_forward(x, params, nonlinearity=nonlinearity)
    err_f32 = float(jnp.max(jnp.abs(out - ref_f32)))
    assert jnp.allclose(out, ref_f32, atol=6e-2, rtol=6e-2), err_f32

    print("KERNEL_OK")
</pallas_src>

<mosaic_0001>
module attributes {stable_mosaic.version = 11 : i64} {
  func.func @_fused_mlp_kernel(%arg0: i32, %arg1: memref<64x128xf32, #tpu.memory_space<vmem>>, %arg2: memref<128x128xbf16, #tpu.memory_space<vmem>>, %arg3: memref<1x128xf32, #tpu.memory_space<vmem>>, %arg4: memref<128x128xbf16, #tpu.memory_space<vmem>>, %arg5: memref<1x128xf32, #tpu.memory_space<vmem>>, %arg6: memref<128x128xbf16, #tpu.memory_space<vmem>>, %arg7: memref<1x128xf32, #tpu.memory_space<vmem>>, %arg8: memref<64x128xf32, #tpu.memory_space<vmem>>) attributes {dimension_semantics = [#tpu.dimension_semantics<parallel>], iteration_bounds = array<i64: 1>, scalar_prefetch = 0 : i64, scratch_operands = 0 : i64, tpu.core_type = #tpu.core_type<tc>, window_params = [{transform_indices = @transform_0, window_bounds = array<i64: 64, 128>}, {pipeline_mode = #tpu.pipeline_mode<synchronous>, transform_indices = @transform_1, window_bounds = array<i64: 128, 128>}, {pipeline_mode = #tpu.pipeline_mode<synchronous>, transform_indices = @transform_2, window_bounds = array<i64: 1, 128>}, {pipeline_mode = #tpu.pipeline_mode<synchronous>, transform_indices = @transform_3, window_bounds = array<i64: 128, 128>}, {pipeline_mode = #tpu.pipeline_mode<synchronous>, transform_indices = @transform_4, window_bounds = array<i64: 1, 128>}, {pipeline_mode = #tpu.pipeline_mode<synchronous>, transform_indices = @transform_5, window_bounds = array<i64: 128, 128>}, {pipeline_mode = #tpu.pipeline_mode<synchronous>, transform_indices = @transform_6, window_bounds = array<i64: 1, 128>}, {transform_indices = @transform_7, window_bounds = array<i64: 64, 128>}]} {
    %c0 = arith.constant 0 : index
    %c0_0 = arith.constant 0 : index
    %0 = vector.load %arg1[%c0, %c0_0] : memref<64x128xf32, #tpu.memory_space<vmem>>, vector<64x128xf32>
    %c0_1 = arith.constant 0 : index
    %c0_2 = arith.constant 0 : index
    %1 = vector.load %arg2[%c0_1, %c0_2] : memref<128x128xbf16, #tpu.memory_space<vmem>>, vector<128x128xbf16>
    %c0_3 = arith.constant 0 : index
    %c0_4 = arith.constant 0 : index
    %2 = vector.load %arg3[%c0_3, %c0_4] : memref<1x128xf32, #tpu.memory_space<vmem>>, vector<1x128xf32>
    %3 = arith.truncf %0 : vector<64x128xf32> to vector<64x128xbf16>
    %cst = arith.constant dense<0.000000e+00> : vector<64x128xf32>
    %4 = tpu.matmul %3, %1, %cst {dimension_numbers = #tpu.dot_dimension_numbers<[1], [0], [0], [1], [0, 0, 1, 1], [], []>} : vector<64x128xbf16>, vector<128x128xbf16>, vector<64x128xf32> -> vector<64x128xf32>
    %5 = vector.broadcast %2 : vector<1x128xf32> to vector<64x128xf32>
    %6 = arith.addf %4, %5 : vector<64x128xf32>
    %7 = math.tanh %6 : vector<64x128xf32>
    %c0_5 = arith.constant 0 : index
    %c0_6 = arith.constant 0 : index
    %8 = vector.load %arg4[%c0_5, %c0_6] : memref<128x128xbf16, #tpu.memory_space<vmem>>, vector<128x128xbf16>
    %c0_7 = arith.constant 0 : index
    %c0_8 = arith.constant 0 : index
    %9 = vector.load %arg5[%c0_7, %c0_8] : memref<1x128xf32, #tpu.memory_space<vmem>>, vector<1x128xf32>
    %10 = arith.truncf %7 : vector<64x128xf32> to vector<64x128xbf16>
    %cst_9 = arith.constant dense<0.000000e+00> : vector<64x128xf32>
    %11 = tpu.matmul %10, %8, %cst_9 {dimension_numbers = #tpu.dot_dimension_numbers<[1], [0], [0], [1], [0, 0, 1, 1], [], []>} : vector<64x128xbf16>, vector<128x128xbf16>, vector<64x128xf32> -> vector<64x128xf32>
    %12 = vector.broadcast %9 : vector<1x128xf32> to vector<64x128xf32>
    %13 = arith.addf %11, %12 : vector<64x128xf32>
    %14 = math.tanh %13 : vector<64x128xf32>
    %c0_10 = arith.constant 0 : index
    %c0_11 = arith.constant 0 : index
    %15 = vector.load %arg6[%c0_10, %c0_11] : memref<128x128xbf16, #tpu.memory_space<vmem>>, vector<128x128xbf16>
    %c0_12 = arith.constant 0 : index
    %c0_13 = arith.constant 0 : index
    %16 = vector.load %arg7[%c0_12, %c0_13] : memref<1x128xf32, #tpu.memory_space<vmem>>, vector<1x128xf32>
    %17 = arith.truncf %14 : vector<64x128xf32> to vector<64x128xbf16>
    %cst_14 = arith.constant dense<0.000000e+00> : vector<64x128xf32>
    %18 = tpu.matmul %17, %15, %cst_14 {dimension_numbers = #tpu.dot_dimension_numbers<[1], [0], [0], [1], [0, 0, 1, 1], [], []>} : vector<64x128xbf16>, vector<128x128xbf16>, vector<64x128xf32> -> vector<64x128xf32>
    %19 = vector.broadcast %16 : vector<1x128xf32> to vector<64x128xf32>
    %20 = arith.addf %18, %19 : vector<64x128xf32>
    %c0_15 = arith.constant 0 : index
    %c0_16 = arith.constant 0 : index
    %21 = vector.load %arg8[%c0_15, %c0_16] : memref<64x128xf32, #tpu.memory_space<vmem>>, vector<64x128xf32>
    tpu.vector_store %arg8[%c0_15, %c0_16], %20 {strides = array<i32>} : memref<64x128xf32, #tpu.memory_space<vmem>>, vector<64x128xf32>,
    return
  }
  func.func @transform_0(%arg0: i32) -> (i32, i32) {
    %c0_i32 = arith.constant 0 : i32
    %c0_i32_0 = arith.constant 0 : i32
    return %arg0, %c0_i32 : i32, i32
  }
  func.func @transform_1(%arg0: i32) -> (i32, i32) {
    %c0_i32 = arith.constant 0 : i32
    %c0_i32_0 = arith.constant 0 : i32
    %c0_i32_1 = arith.constant 0 : i32
    return %c0_i32, %c0_i32_0 : i32, i32
  }
  func.func @transform_2(%arg0: i32) -> (i32, i32) {
    %c0_i32 = arith.constant 0 : i32
    %c0_i32_0 = arith.constant 0 : i32
    %c0_i32_1 = arith.constant 0 : i32
    return %c0_i32, %c0_i32_0 : i32, i32
  }
  func.func @transform_3(%arg0: i32) -> (i32, i32) {
    %c0_i32 = arith.constant 0 : i32
    %c0_i32_0 = arith.constant 0 : i32
    %c0_i32_1 = arith.constant 0 : i32
    return %c0_i32, %c0_i32_0 : i32, i32
  }
  func.func @transform_4(%arg0: i32) -> (i32, i32) {
    %c0_i32 = arith.constant 0 : i32
    %c0_i32_0 = arith.constant 0 : i32
    %c0_i32_1 = arith.constant 0 : i32
    return %c0_i32, %c0_i32_0 : i32, i32
  }
  func.func @transform_5(%arg0: i32) -> (i32, i32) {
    %c0_i32 = arith.constant 0 : i32
    %c0_i32_0 = arith.constant 0 : i32
    %c0_i32_1 = arith.constant 0 : i32
    return %c0_i32, %c0_i32_0 : i32, i32
  }
  func.func @transform_6(%arg0: i32) -> (i32, i32) {
    %c0_i32 = arith.constant 0 : i32
    %c0_i32_0 = arith.constant 0 : i32
    %c0_i32_1 = arith.constant 0 : i32
    return %c0_i32, %c0_i32_0 : i32, i32
  }
  func.func @transform_7(%arg0: i32) -> (i32, i32) {
    %c0_i32 = arith.constant 0 : i32
    %c0_i32_0 = arith.constant 0 : i32
    return %arg0, %c0_i32 : i32, i32
  }
}

</mosaic_0001>

<llo_original>
// kernel: _densenet_forward_impl.1
$region0: #{_densenet_forward_impl.1}
  #allocation0 [shape = 'u32[]', space=smem, size = 0x4, offset = 0x4, fixed_abs, tag = 'smem constant byte address 0x4 - core index']
  #allocation1 [shape = 'u32[144,128]{1,0:T(1,128)}', space=vmem, size = 0x12000, scoped, tag = 'internal scratch']
  %s0 = inlined_call_operand.vmem [shape: f32[64,128], index: 0, kind: input, shape index: {}]
  %s1 = inlined_call_operand.vmem [shape: bf16[128,128], index: 1, kind: input, shape index: {}]
  %s2 = inlined_call_operand.vmem [shape: f32[1,128], index: 2, kind: input, shape index: {}]
  %s3 = inlined_call_operand.vmem [shape: bf16[128,128], index: 3, kind: input, shape index: {}]
  %s4 = inlined_call_operand.vmem [shape: f32[1,128], index: 4, kind: input, shape index: {}]
  %s5 = inlined_call_operand.vmem [shape: bf16[128,128], index: 5, kind: input, shape index: {}]
  %s6 = inlined_call_operand.vmem [shape: f32[1,128], index: 6, kind: input, shape index: {}]
  %s7 = inlined_call_operand.vmem [shape: f32[64,128], index: 7, kind: output, shape index: {}]
  %s8 = sld [smem:[#allocation0]]
  $region38: #{_densenet_forward_impl.1} parent=0
    _
  %s10 = ssub.s32 1, %s8
  %s11 = scalar_select 0, %s10, %s8
  // Predicated region
  $region2: #{_densenet_forward_impl.1} parent=0 // pred_check
    _
  $region3: #{_densenet_forward_impl.1} parent=0 // pred_check_branch
    %13 = sbr.rel (0) target = $region5
  $region4: #{_densenet_forward_impl.1} parent=0 // pred_region
    _
  $region5: #{_densenet_forward_impl.1} parent=0 // pred_fallthru
    _
  // Predicated region
  $region6: #{_densenet_forward_impl.1} parent=0 // pred_check
    _
  $region7: #{_densenet_forward_impl.1} parent=0 // pred_check_branch
    %15 = sbr.rel (0) target = $region9
  $region8: #{_densenet_forward_impl.1} parent=0 // pred_region
    _
  $region9: #{_densenet_forward_impl.1} parent=0 // pred_fallthru
    _
  // Predicated region
  $region10: #{_densenet_forward_impl.1} parent=0 // pred_check
    _
  $region11: #{_densenet_forward_impl.1} parent=0 // pred_check_branch
    %17 = sbr.rel (0) target = $region13
  $region12: #{_densenet_forward_impl.1} parent=0 // pred_region
    _
  $region13: #{_densenet_forward_impl.1} parent=0 // pred_fallthru
    _
  // Predicated region
  $region14: #{_densenet_forward_impl.1} parent=0 // pred_check
    _
  $region15: #{_densenet_forward_impl.1} parent=0 // pred_check_branch
    %19 = sbr.rel (0) target = $region17
  $region16: #{_densenet_forward_impl.1} parent=0 // pred_region
    _
  $region17: #{_densenet_forward_impl.1} parent=0 // pred_fallthru
    _
  // Predicated region
  $region18: #{_densenet_forward_impl.1} parent=0 // pred_check
    _
  $region19: #{_densenet_forward_impl.1} parent=0 // pred_check_branch
    %21 = sbr.rel (0) target = $region21
  $region20: #{_densenet_forward_impl.1} parent=0 // pred_region
    _
  $region21: #{_densenet_forward_impl.1} parent=0 // pred_fallthru
    _
  // Predicated region
  $region22: #{_densenet_forward_impl.1} parent=0 // pred_check
    _
  $region23: #{_densenet_forward_impl.1} parent=0 // pred_check_branch
    %23 = sbr.rel (0) target = $region25
  $region24: #{_densenet_forward_impl.1} parent=0 // pred_region
    _
  $region25: #{_densenet_forward_impl.1} parent=0 // pred_fallthru
    _
  // Predicated region
  $region26: #{_densenet_forward_impl.1} parent=0 // pred_check
    _
  $region27: #{_densenet_forward_impl.1} parent=0 // pred_check_branch
    %25 = sbr.rel (0) target = $region29
  $region28: #{_densenet_forward_impl.1} parent=0 // pred_region
    _
  $region29: #{_densenet_forward_impl.1} parent=0 // pred_fallthru
    _
  %v27 = vld [vmem:[%s0] sm:$0xff]
  %v28 = vld [vmem:[%s0 + $0x8] sm:$0xff]
  %v29 = vld [vmem:[%s0 + $0x10] sm:$0xff]
  %v30 = vld [vmem:[%s0 + $0x18] sm:$0xff]
  %v31 = vld [vmem:[%s0 + $0x20] sm:$0xff]
  %v32 = vld [vmem:[%s0 + $0x28] sm:$0xff]
  %v33 = vld [vmem:[%s0 + $0x30] sm:$0xff]
  %v34 = vld [vmem:[%s0 + $0x38] sm:$0xff]
  %v35 = vld [vmem:[%s1] sm:$0xf]
  %v36 = vld [vmem:[%s1 + $0x4] sm:$0xf]
  %v37 = vld [vmem:[%s1 + $0x8] sm:$0xf]
  %v38 = vld [vmem:[%s1 + $0xc] sm:$0xf]
  %v39 = vld [vmem:[%s1 + $0x10] sm:$0xf]
  %v40 = vld [vmem:[%s1 + $0x14] sm:$0xf]
  %v41 = vld [vmem:[%s1 + $0x18] sm:$0xf]
  %v42 = vld [vmem:[%s1 + $0x1c] sm:$0xf]
  %v43 = vld [vmem:[%s1 + $0x20] sm:$0xf]
  %v44 = vld [vmem:[%s1 + $0x24] sm:$0xf]
  %v45 = vld [vmem:[%s1 + $0x28] sm:$0xf]
  %v46 = vld [vmem:[%s1 + $0x2c] sm:$0xf]
  %v47 = vld [vmem:[%s1 + $0x30] sm:$0xf]
  %v48 = vld [vmem:[%s1 + $0x34] sm:$0xf]
  %v49 = vld [vmem:[%s1 + $0x38] sm:$0xf]
  %v50 = vld [vmem:[%s1 + $0x3c] sm:$0xf]
  %v51 = vld [vmem:[%s2] sm:$0x1]
  %v52 = vpack.c.bf16 %v28, %v27
  %v53 = vpack.c.bf16 %v30, %v29
  %v54 = vpack.c.bf16 %v32, %v31
  %v55 = vpack.c.bf16 %v34, %v33
  %v57 = vlaneseq
  %v58 = vshrl.u32 %v57, 7
  %v59 = vsub.s32 0, %v58
  %v60 = vrot.slane %v51, %v59
  %v78 = vunpack.c.l.b16 %v35
  %v79 = vunpack.c.l.b16 %v36
  %v80 = vunpack.c.l.b16 %v37
  %v81 = vunpack.c.l.b16 %v38
  %v82 = vunpack.c.l.b16 %v39
  %v83 = vunpack.c.l.b16 %v40
  %v84 = vunpack.c.l.b16 %v41
  %v85 = vunpack.c.l.b16 %v42
  %v86 = vunpack.c.l.b16 %v43
  %v87 = vunpack.c.l.b16 %v44
  %v88 = vunpack.c.l.b16 %v45
  %v89 = vunpack.c.l.b16 %v46
  %v90 = vunpack.c.l.b16 %v47
  %v91 = vunpack.c.l.b16 %v48
  %v92 = vunpack.c.l.b16 %v49
  %v93 = vunpack.c.l.b16 %v50
  %v94 = vpack.c.b16 %v79, %v78
  %v95 = vpack.c.b16 %v81, %v80
  %v96 = vpack.c.b16 %v83, %v82
  %v97 = vpack.c.b16 %v85, %v84
  %v98 = vpack.c.b16 %v87, %v86
  %v99 = vpack.c.b16 %v89, %v88
  %v100 = vpack.c.b16 %v91, %v90
  %v101 = vpack.c.b16 %v93, %v92
  %110 = vmatprep.subr.bf16.mxu0 0
  %111 = vmatpush1.bf16.msra.mxu0 %v94
  %112 = vmatprep.subr.bf16.mxu0 0
  %113 = vmatpush1.bf16.msra.mxu0 %v95
  %114 = vmatprep.subr.bf16.mxu0 0
  %115 = vmatpush1.bf16.msra.mxu0 %v96
  %116 = vmatprep.subr.bf16.mxu0 0
  %117 = vmatpush1.bf16.msra.mxu0 %v97
  %118 = vmatprep.subr.bf16.mxu0 0
  %119 = vmatpush1.bf16.msra.mxu0 %v98
  %120 = vmatprep.subr.bf16.mxu0 0
  %121 = vmatpush1.bf16.msra.mxu0 %v99
  %122 = vmatprep.subr.bf16.mxu0 0
  %123 = vmatpush1.bf16.msra.mxu0 %v100
  %124 = vmatprep.subr.bf16.mxu0 0
  %125 = vmatpush1.bf16.msra.mxu0 %v101
  %126 = vmatprep.subr.bf16.mxu0 0
  %127 = vmatpush1.bf16.msra.mxu0 0
  %128 = vmatprep.subr.bf16.mxu0 0
  %129 = vmatpush1.bf16.msra.mxu0 0
  %130 = vmatprep.subr.bf16.mxu0 0
  %131 = vmatpush1.bf16.msra.mxu0 0
  %132 = vmatprep.subr.bf16.mxu0 0
  %133 = vmatpush1.bf16.msra.mxu0 0
  %134 = vmatprep.subr.bf16.mxu0 0
  %135 = vmatpush1.bf16.msra.mxu0 0
  %136 = vmatprep.subr.bf16.mxu0 0
  %137 = vmatpush1.bf16.msra.mxu0 0
  %138 = vmatprep.subr.bf16.mxu0 0
  %139 = vmatpush1.bf16.msra.mxu0 0
  %140 = vmatprep.subr.bf16.mxu0 0
  %141 = vmatpush1.bf16.msra.mxu0 0
  %142 = vmatprep.mubr.bf16.mxu0 0
  %143 = vmatmul.mubr.bf16.gmra.mrb[0].mxu0 %v52
  %v144 = vpop.f32.mrb[0].mxu0
  %v145 = vadd.f32 %v60, %v144
  %v146 = vpop.f32.mrb[0].mxu0
  %v147 = vpop.f32.mrb[0].mxu0
  %v148 = vadd.f32 %v60, %v147
  %v149 = vpop.f32.mrb[0].mxu0
  %150 = vmatprep.mubr.bf16.mxu0 0
  %151 = vmatmul.mubr.bf16.gmra.mrb[0].mxu0 %v53
  %v152 = vpop.f32.mrb[0].mxu0
  %v153 = vadd.f32 %v60, %v152
  %v154 = vpop.f32.mrb[0].mxu0
  %v155 = vpop.f32.mrb[0].mxu0
  %v156 = vadd.f32 %v60, %v155
  %v157 = vpop.f32.mrb[0].mxu0
  %158 = vmatprep.mubr.bf16.mxu0 0
  %159 = vmatmul.mubr.bf16.gmra.mrb[0].mxu0 %v54
  %v160 = vpop.f32.mrb[0].mxu0
  %v161 = vadd.f32 %v60, %v160
  %v162 = vpop.f32.mrb[0].mxu0
  %v163 = vpop.f32.mrb[0].mxu0
  %v164 = vadd.f32 %v60, %v163
  %v165 = vpop.f32.mrb[0].mxu0
  %166 = vmatprep.mubr.bf16.mxu0 0
  %167 = vmatmul.mubr.bf16.gmra.mrb[0].mxu0 %v55
  %v168 = vpop.f32.mrb[0].mxu0
  %v169 = vadd.f32 %v60, %v168
  %v170 = vpop.f32.mrb[0].mxu0
  %v171 = vpop.f32.mrb[0].mxu0
  %v172 = vadd.f32 %v60, %v171
  %v173 = vpop.f32.mrb[0].mxu0
  %174 = vdwg.mxu0
  %v175 = vtanh.pop %v145
  %v176 = vtanh.pop %v148
  %v177 = vtanh.pop %v153
  %v178 = vtanh.pop %v156
  %v179 = vtanh.pop %v161
  %v180 = vtanh.pop %v164
  %v181 = vtanh.pop %v169
  %v182 = vtanh.pop %v172
  %v183 = vld [vmem:[%s3] sm:$0xf]
  %v184 = vld [vmem:[%s3 + $0x4] sm:$0xf]
  %v185 = vld [vmem:[%s3 + $0x8] sm:$0xf]
  %v186 = vld [vmem:[%s3 + $0xc] sm:$0xf]
  %v187 = vld [vmem:[%s3 + $0x10] sm:$0xf]
  %v188 = vld [vmem:[%s3 + $0x14] sm:$0xf]
  %v189 = vld [vmem:[%s3 + $0x18] sm:$0xf]
  %v190 = vld [vmem:[%s3 + $0x1c] sm:$0xf]
  %v191 = vld [vmem:[%s3 + $0x20] sm:$0xf]
  %v192 = vld [vmem:[%s3 + $0x24] sm:$0xf]
  %v193 = vld [vmem:[%s3 + $0x28] sm:$0xf]
  %v194 = vld [vmem:[%s3 + $0x2c] sm:$0xf]
  %v195 = vld [vmem:[%s3 + $0x30] sm:$0xf]
  %v196 = vld [vmem:[%s3 + $0x34] sm:$0xf]
  %v197 = vld [vmem:[%s3 + $0x38] sm:$0xf]
  %v198 = vld [vmem:[%s3 + $0x3c] sm:$0xf]
  %v199 = vld [vmem:[%s4] sm:$0x1]
  %v200 = vpack.c.bf16 %v176, %v175
  %v201 = vpack.c.bf16 %v178, %v177
  %v202 = vpack.c.bf16 %v180, %v179
  %v203 = vpack.c.bf16 %v182, %v181
  %v205 = vlaneseq
  %v206 = vshrl.u32 %v205, 7
  %v207 = vsub.s32 0, %v206
  %v208 = vrot.slane %v199, %v207
  %v226 = vunpack.c.l.b16 %v183
  %v227 = vunpack.c.l.b16 %v184
  %v228 = vunpack.c.l.b16 %v185
  %v229 = vunpack.c.l.b16 %v186
  %v230 = vunpack.c.l.b16 %v187
  %v231 = vunpack.c.l.b16 %v188
  %v232 = vunpack.c.l.b16 %v189
  %v233 = vunpack.c.l.b16 %v190
  %v234 = vunpack.c.l.b16 %v191
  %v235 = vunpack.c.l.b16 %v192
  %v236 = vunpack.c.l.b16 %v193
  %v237 = vunpack.c.l.b16 %v194
  %v238 = vunpack.c.l.b16 %v195
  %v239 = vunpack.c.l.b16 %v196
  %v240 = vunpack.c.l.b16 %v197
  %v241 = vunpack.c.l.b16 %v198
  %v242 = vpack.c.b16 %v227, %v226
  %v243 = vpack.c.b16 %v229, %v228
  %v244 = vpack.c.b16 %v231, %v230
  %v245 = vpack.c.b16 %v233, %v232
  %v246 = vpack.c.b16 %v235, %v234
  %v247 = vpack.c.b16 %v237, %v236
  %v248 = vpack.c.b16 %v239, %v238
  %v249 = vpack.c.b16 %v241, %v240
  %258 = vmatprep.subr.bf16.mxu0 0
  %259 = vmatpush1.bf16.msra.mxu0 %v242
  %260 = vmatprep.subr.bf16.mxu0 0
  %261 = vmatpush1.bf16.msra.mxu0 %v243
  %262 = vmatprep.subr.bf16.mxu0 0
  %263 = vmatpush1.bf16.msra.mxu0 %v244
  %264 = vmatprep.subr.bf16.mxu0 0
  %265 = vmatpush1.bf16.msra.mxu0 %v245
  %266 = vmatprep.subr.bf16.mxu0 0
  %267 = vmatpush1.bf16.msra.mxu0 %v246
  %268 = vmatprep.subr.bf16.mxu0 0
  %269 = vmatpush1.bf16.msra.mxu0 %v247
  %270 = vmatprep.subr.bf16.mxu0 0
  %271 = vmatpush1.bf16.msra.mxu0 %v248
  %272 = vmatprep.subr.bf16.mxu0 0
  %273 = vmatpush1.bf16.msra.mxu0 %v249
  %274 = vmatprep.subr.bf16.mxu0 0
  %275 = vmatpush1.bf16.msra.mxu0 0
  %276 = vmatprep.subr.bf16.mxu0 0
  %277 = vmatpush1.bf16.msra.mxu0 0
  %278 = vmatprep.subr.bf16.mxu0 0
  %279 = vmatpush1.bf16.msra.mxu0 0
  %280 = vmatprep.subr.bf16.mxu0 0
  %281 = vmatpush1.bf16.msra.mxu0 0
  %282 = vmatprep.subr.bf16.mxu0 0
  %283 = vmatpush1.bf16.msra.mxu0 0
  %284 = vmatprep.subr.bf16.mxu0 0
  %285 = vmatpush1.bf16.msra.mxu0 0
  %286 = vmatprep.subr.bf16.mxu0 0
  %287 = vmatpush1.bf16.msra.mxu0 0
  %288 = vmatprep.subr.bf16.mxu0 0
  %289 = vmatpush1.bf16.msra.mxu0 0
  %290 = vmatprep.mubr.bf16.mxu0 0
  %291 = vmatmul.mubr.bf16.gmra.mrb[0].mxu0 %v200
  %v292 = vpop.f32.mrb[0].mxu0
  %v293 = vadd.f32 %v208, %v292
  %v294 = vpop.f32.mrb[0].mxu0
  %v295 = vpop.f32.mrb[0].mxu0
  %v296 = vadd.f32 %v208, %v295
  %v297 = vpop.f32.mrb[0].mxu0
  %298 = vmatprep.mubr.bf16.mxu0 0
  %299 = vmatmul.mubr.bf16.gmra.mrb[0].mxu0 %v201
  %v300 = vpop.f32.mrb[0].mxu0
  %v301 = vadd.f32 %v208, %v300
  %v302 = vpop.f32.mrb[0].mxu0
  %v303 = vpop.f32.mrb[0].mxu0
  %v304 = vadd.f32 %v208, %v303
  %v305 = vpop.f32.mrb[0].mxu0
  %306 = vmatprep.mubr.bf16.mxu0 0
  %307 = vmatmul.mubr.bf16.gmra.mrb[0].mxu0 %v202
  %v308 = vpop.f32.mrb[0].mxu0
  %v309 = vadd.f32 %v208, %v308
  %v310 = vpop.f32.mrb[0].mxu0
  %v311 = vpop.f32.mrb[0].mxu0
  %v312 = vadd.f32 %v208, %v311
  %v313 = vpop.f32.mrb[0].mxu0
  %314 = vmatprep.mubr.bf16.mxu0 0
  %315 = vmatmul.mubr.bf16.gmra.mrb[0].mxu0 %v203
  %v316 = vpop.f32.mrb[0].mxu0
  %v317 = vadd.f32 %v208, %v316
  %v318 = vpop.f32.mrb[0].mxu0
  %v319 = vpop.f32.mrb[0].mxu0
  %v320 = vadd.f32 %v208, %v319
  %v321 = vpop.f32.mrb[0].mxu0
  %322 = vdwg.mxu0
  %v323 = vtanh.pop %v293
  %v324 = vtanh.pop %v296
  %v325 = vtanh.pop %v301
  %v326 = vtanh.pop %v304
  %v327 = vtanh.pop %v309
  %v328 = vtanh.pop %v312
  %v329 = vtanh.pop %v317
  %v330 = vtanh.pop %v320
  %v331 = vld [vmem:[%s5] sm:$0xf]
  %v332 = vld [vmem:[%s5 + $0x4] sm:$0xf]
  %v333 = vld [vmem:[%s5 + $0x8] sm:$0xf]
  %v334 = vld [vmem:[%s5 + $0xc] sm:$0xf]
  %v335 = vld [vmem:[%s5 + $0x10] sm:$0xf]
  %v336 = vld [vmem:[%s5 + $0x14] sm:$0xf]
  %v337 = vld [vmem:[%s5 + $0x18] sm:$0xf]
  %v338 = vld [vmem:[%s5 + $0x1c] sm:$0xf]
  %v339 = vld [vmem:[%s5 + $0x20] sm:$0xf]
  %v340 = vld [vmem:[%s5 + $0x24] sm:$0xf]
  %v341 = vld [vmem:[%s5 + $0x28] sm:$0xf]
  %v342 = vld [vmem:[%s5 + $0x2c] sm:$0xf]
  %v343 = vld [vmem:[%s5 + $0x30] sm:$0xf]
  %v344 = vld [vmem:[%s5 + $0x34] sm:$0xf]
  %v345 = vld [vmem:[%s5 + $0x38] sm:$0xf]
  %v346 = vld [vmem:[%s5 + $0x3c] sm:$0xf]
  %v347 = vld [vmem:[%s6] sm:$0x1]
  %v348 = vpack.c.bf16 %v324, %v323
  %v349 = vpack.c.bf16 %v326, %v325
  %v350 = vpack.c.bf16 %v328, %v327
  %v351 = vpack.c.bf16 %v330, %v329
  %v353 = vlaneseq
  %v354 = vshrl.u32 %v353, 7
  %v355 = vsub.s32 0, %v354
  %v356 = vrot.slane %v347, %v355
  %v374 = vunpack.c.l.b16 %v331
  %v375 = vunpack.c.l.b16 %v332
  %v376 = vunpack.c.l.b16 %v333
  %v377 = vunpack.c.l.b16 %v334
  %v378 = vunpack.c.l.b16 %v335
  %v379 = vunpack.c.l.b16 %v336
  %v380 = vunpack.c.l.b16 %v337
  %v381 = vunpack.c.l.b16 %v338
  %v382 = vunpack.c.l.b16 %v339
  %v383 = vunpack.c.l.b16 %v340
  %v384 = vunpack.c.l.b16 %v341
  %v385 = vunpack.c.l.b16 %v342
  %v386 = vunpack.c.l.b16 %v343
  %v387 = vunpack.c.l.b16 %v344
  %v388 = vunpack.c.l.b16 %v345
  %v389 = vunpack.c.l.b16 %v346
  %v390 = vpack.c.b16 %v375, %v374
  %v391 = vpack.c.b16 %v377, %v376
  %v392 = vpack.c.b16 %v379, %v378
  %v393 = vpack.c.b16 %v381, %v380
  %v394 = vpack.c.b16 %v383, %v382
  %v395 = vpack.c.b16 %v385, %v384
  %v396 = vpack.c.b16 %v387, %v386
  %v397 = vpack.c.b16 %v389, %v388
  %406 = vmatprep.subr.bf16.mxu0 0
  %407 = vmatpush1.bf16.msra.mxu0 %v390
  %408 = vmatprep.subr.bf16.mxu0 0
  %409 = vmatpush1.bf16.msra.mxu0 %v391
  %410 = vmatprep.subr.bf16.mxu0 0
  %411 = vmatpush1.bf16.msra.mxu0 %v392
  %412 = vmatprep.subr.bf16.mxu0 0
  %413 = vmatpush1.bf16.msra.mxu0 %v393
  %414 = vmatprep.subr.bf16.mxu0 0
  %415 = vmatpush1.bf16.msra.mxu0 %v394
  %416 = vmatprep.subr.bf16.mxu0 0
  %417 = vmatpush1.bf16.msra.mxu0 %v395
  %418 = vmatprep.subr.bf16.mxu0 0
  %419 = vmatpush1.bf16.msra.mxu0 %v396
  %420 = vmatprep.subr.bf16.mxu0 0
  %421 = vmatpush1.bf16.msra.mxu0 %v397
  %422 = vmatprep.subr.bf16.mxu0 0
  %423 = vmatpush1.bf16.msra.mxu0 0
  %424 = vmatprep.subr.bf16.mxu0 0
  %425 = vmatpush1.bf16.msra.mxu0 0
  %426 = vmatprep.subr.bf16.mxu0 0
  %427 = vmatpush1.bf16.msra.mxu0 0
  %428 = vmatprep.subr.bf16.mxu0 0
  %429 = vmatpush1.bf16.msra.mxu0 0
  %430 = vmatprep.subr.bf16.mxu0 0
  %431 = vmatpush1.bf16.msra.mxu0 0
  %432 = vmatprep.subr.bf16.mxu0 0
  %433 = vmatpush1.bf16.msra.mxu0 0
  %434 = vmatprep.subr.bf16.mxu0 0
  %435 = vmatpush1.bf16.msra.mxu0 0
  %436 = vmatprep.subr.bf16.mxu0 0
  %437 = vmatpush1.bf16.msra.mxu0 0
  %438 = vmatprep.mubr.bf16.mxu0 0
  %439 = vmatmul.mubr.bf16.gmra.mrb[0].mxu0 %v348
  %v440 = vpop.f32.mrb[0].mxu0
  %v441 = vadd.f32 %v356, %v440
  %v442 = vpop.f32.mrb[0].mxu0
  %v443 = vpop.f32.mrb[0].mxu0
  %v444 = vadd.f32 %v356, %v443
  %v445 = vpop.f32.mrb[0].mxu0
  %446 = vmatprep.mubr.bf16.mxu0 0
  %447 = vmatmul.mubr.bf16.gmra.mrb[0].mxu0 %v349
  %v448 = vpop.f32.mrb[0].mxu0
  %v449 = vadd.f32 %v356, %v448
  %v450 = vpop.f32.mrb[0].mxu0
  %v451 = vpop.f32.mrb[0].mxu0
  %v452 = vadd.f32 %v356, %v451
  %v453 = vpop.f32.mrb[0].mxu0
  %454 = vmatprep.mubr.bf16.mxu0 0
  %455 = vmatmul.mubr.bf16.gmra.mrb[0].mxu0 %v350
  %v456 = vpop.f32.mrb[0].mxu0
  %v457 = vadd.f32 %v356, %v456
  %v458 = vpop.f32.mrb[0].mxu0
  %v459 = vpop.f32.mrb[0].mxu0
  %v460 = vadd.f32 %v356, %v459
  %v461 = vpop.f32.mrb[0].mxu0
  %462 = vmatprep.mubr.bf16.mxu0 0
  %463 = vmatmul.mubr.bf16.gmra.mrb[0].mxu0 %v351
  %v464 = vpop.f32.mrb[0].mxu0
  %v465 = vadd.f32 %v356, %v464
  %v466 = vpop.f32.mrb[0].mxu0
  %v467 = vpop.f32.mrb[0].mxu0
  %v468 = vadd.f32 %v356, %v467
  %v469 = vpop.f32.mrb[0].mxu0
  %470 = vdwg.mxu0
  %471 = vst [vmem:[%s7] sm:$0xff] %v441
  %472 = vst [vmem:[%s7 + $0x8] sm:$0xff] %v444
  %473 = vst [vmem:[%s7 + $0x10] sm:$0xff] %v449
  %474 = vst [vmem:[%s7 + $0x18] sm:$0xff] %v452
  %475 = vst [vmem:[%s7 + $0x20] sm:$0xff] %v457
  %476 = vst [vmem:[%s7 + $0x28] sm:$0xff] %v460
  %477 = vst [vmem:[%s7 + $0x30] sm:$0xff] %v465
  %478 = vst [vmem:[%s7 + $0x38] sm:$0xff] %v468
  // Predicated region
  $region30: #{_densenet_forward_impl.1} parent=0 // pred_check
    _
  $region31: #{_densenet_forward_impl.1} parent=0 // pred_check_branch
    %480 = sbr.rel (0) target = $region33
  $region32: #{_densenet_forward_impl.1} parent=0 // pred_region
    _
  $region33: #{_densenet_forward_impl.1} parent=0 // pred_fallthru
    _
  // Predicated region
  $region34: #{_densenet_forward_impl.1} parent=0 // pred_check
    _
  $region35: #{_densenet_forward_impl.1} parent=0 // pred_check_branch
    %482 = sbr.rel (0) target = $region37
  $region36: #{_densenet_forward_impl.1} parent=0 // pred_region
    _
  $region37: #{_densenet_forward_impl.1} parent=0 // pred_fallthru
    _

</llo_original>
